<compile_context>
chip_gen: v7x
topology: tpu7x:2x2x1
jax: 0.10.0
libtpu: 0.0.40
codegen_flags: <defaults>
</compile_context>

<pallas_src>
import functools

import jax
import jax.numpy as jnp
from jax import lax
from jax.experimental import pallas as pl
from jax.experimental.pallas import tpu as pltpu


def _round_up(x, m):
    return (x + m - 1) // m * m


_VMEM_CACHE = None


def _vmem_limit_bytes():
    """Generation-aware VMEM budget (v7x: 64 MiB physical, v5e/v6e: 128 MiB)."""
    global _VMEM_CACHE
    if _VMEM_CACHE is None:
        cap = 64 * 1024 * 1024
        try:
            cap = int(getattr(pltpu.get_tpu_info(), "vmem_capacity_bytes", cap) or cap)
        except Exception:
            pass
        _VMEM_CACHE = int(min(max(cap - 8 * 1024 * 1024, 32 * 1024 * 1024),
                              100 * 1024 * 1024))
    return _VMEM_CACHE


def _row_tile(n):
    """Row tile: big enough to amortize ~0.35us/grid-step, but keeps >=2 row
    tiles on mid-size graphs so v7x megacore (2 TensorCores) engages."""
    if n <= 256:
        return 128
    if n <= 2048:
        return 256
    return 512


def _lane_pad(cout):
    """Lane-dense output width; fill the 256-wide MXU on v6e/v7x when Cout > 128."""
    return 128 if cout <= 128 else _round_up(cout, 256)


# ----------------------------------------------------------------------------
# Projection kernel:  out = scale * (x @ W)      (scale is per-row [TM,1])
# ----------------------------------------------------------------------------
def _proj_scale_kernel(x_ref, w_ref, s_ref, o_ref):
    xw = jnp.dot(x_ref[...], w_ref[...], preferred_element_type=jnp.float32)
    o_ref[...] = (s_ref[...] * xw).astype(o_ref.dtype)


# ----------------------------------------------------------------------------
# Dense-adjacency propagation:  out = dinv * ((A+I) @ xw_s)
#   grid = (row tiles, k reduction tiles); f32 accumulator in VMEM scratch.
#   Self loop is folded into the adjacency tile, operands stay bf16 on the MXU.
# ----------------------------------------------------------------------------
def _prop_kernel_resident(adj_ref, xw_ref, dinv_ref, o_ref, acc_ref, *, tk):
    """xw_s fully VMEM-resident; slice the k-chunk in-kernel."""
    k = pl.program_id(1)

    @pl.when(k == 0)
    def _init():
        acc_ref[...] = jnp.zeros_like(acc_ref)

    ks = pl.multiple_of(k * tk, tk)
    acc_ref[...] += jnp.dot(adj_ref[...], xw_ref[pl.ds(ks, tk), :],
                            preferred_element_type=jnp.float32)

    @pl.when(k == pl.num_programs(1) - 1)
    def _fin():
        o_ref[...] = (dinv_ref[...] * acc_ref[...]).astype(o_ref.dtype)


def _prop_kernel_stream(adj_ref, xwk_ref, dinv_ref, o_ref, acc_ref):
    """Fallback: xw_s streamed per k tile (very large graphs)."""
    k = pl.program_id(1)

    @pl.when(k == 0)
    def _init():
        acc_ref[...] = jnp.zeros_like(acc_ref)

    acc_ref[...] += jnp.dot(adj_ref[...], xwk_ref[...],
                            preferred_element_type=jnp.float32)

    @pl.when(k == pl.num_programs(1) - 1)
    def _fin():
        o_ref[...] = (dinv_ref[...] * acc_ref[...]).astype(o_ref.dtype)


def sat_conv_dense(x, w, adj, *, adj_compute_dtype=jnp.bfloat16):
    """Dense branch: out = D^-1/2 (A+I) D^-1/2 @ (x @ W).

    Note: bf16 adjacency / projected features are exact for 0/1 adjacency; pass
    adj_compute_dtype=jnp.float32 for weighted dense adjacency if full precision
    of the intermediates is required (accumulation is f32 either way).
    """
    n, cin = x.shape
    cout = w.shape[1]
    dtype = x.dtype
    out_bytes = jnp.dtype(dtype).itemsize
    adj_bytes = jnp.dtype(adj_compute_dtype).itemsize

    vmem = _vmem_limit_bytes()
    TM = _row_tile(n)
    n_pad = _round_up(n, TM)
    TK = 128
    for cand in (2048, 1024, 512, 256, 128):
        if cand <= n_pad and n_pad % cand == 0:
            TK = cand
            break
    cp = _lane_pad(cout)
    nm = n_pad // TM
    nk = n_pad // TK
    pad = n_pad - n

    # Degrees of (A + I): single pass over the narrow cast, f32 accumulation.
    adj_c = adj.astype(adj_compute_dtype)
    deg = jnp.sum(adj_c, axis=-1, dtype=jnp.float32) + 1.0
    dinv = lax.rsqrt(deg)                      # deg >= 1, no zero guard needed

    # Fold self loops into the adjacency and pad in one fused build (no extra
    # full-array copy when n is already tile-aligned).
    adj_ai = adj_c + jnp.eye(n, dtype=adj_compute_dtype)
    adj_p = jnp.pad(adj_ai, ((0, pad), (0, pad))) if pad else adj_ai

    x_p = jnp.pad(x, ((0, pad), (0, 0))) if pad else x
    w_p = jnp.pad(w, ((0, 0), (0, cp - cout))) if cp != cout else w
    dinv_col = dinv[:, None]
    dinv_p = (jnp.pad(dinv_col, ((0, pad), (0, 0)), constant_values=1.0)
              if pad else dinv_col)

    # Phase 1: xw_s = dinv * (x @ W), stored in the narrow compute dtype so the
    # propagation matmul runs with homogeneous bf16 MXU operands.
    xw_s = pl.pallas_call(
        _proj_scale_kernel,
        out_shape=jax.ShapeDtypeStruct((n_pad, cp), adj_compute_dtype),
        grid=(nm,),
        in_specs=[
            pl.BlockSpec((TM, cin), lambda i: (i, 0)),
            pl.BlockSpec((cin, cp), lambda i: (0, 0)),     # W resident
            pl.BlockSpec((TM, 1), lambda i: (i, 0)),
        ],
        out_specs=pl.BlockSpec((TM, cp), lambda i: (i, 0)),
        compiler_params=pltpu.CompilerParams(
            dimension_semantics=("parallel",),
            vmem_limit_bytes=vmem),
    )(x_p, w_p, dinv_p)

    # Phase 2: out = dinv * ((A+I) @ xw_s).  Keep xw_s fully VMEM-resident when
    # it fits (read once from HBM instead of once per row tile).
    resident_bytes = (2 * TM * TK * adj_bytes          # adj tile, double-buffered
                      + 2 * n_pad * cp * adj_bytes     # resident xw_s (2 bufs worst case)
                      + 2 * TM * cp * out_bytes        # output tile
                      + TM * cp * 4)                   # f32 accumulator
    use_resident = resident_bytes <= int(0.7 * vmem)

    if use_resident:
        kernel = functools.partial(_prop_kernel_resident, tk=TK)
        xw_spec = pl.BlockSpec((n_pad, cp), lambda i, k: (0, 0))
    else:
        kernel = _prop_kernel_stream
        xw_spec = pl.BlockSpec((TK, cp), lambda i, k: (k, 0))

    cost = pl.CostEstimate(
        flops=2 * n_pad * n_pad * cp,
        transcendentals=0,
        bytes_accessed=(n_pad * n_pad * adj_bytes
                        + n_pad * cp * adj_bytes
                        + n_pad * cp * out_bytes
                        + n_pad * 4))

    out_p = pl.pallas_call(
        kernel,
        out_shape=jax.ShapeDtypeStruct((n_pad, cp), dtype),
        grid=(nm, nk),
        in_specs=[
            pl.BlockSpec((TM, TK), lambda i, k: (i, k)),   # adjacency tile (bf16)
            xw_spec,                                       # xw_s (resident or per-k)
            pl.BlockSpec((TM, 1), lambda i, k: (i, 0)),    # dinv rows
        ],
        out_specs=pl.BlockSpec((TM, cp), lambda i, k: (i, 0)),
        scratch_shapes=[pltpu.VMEM((TM, cp), jnp.float32)],
        compiler_params=pltpu.CompilerParams(
            dimension_semantics=("parallel", "arbitrary"),
            vmem_limit_bytes=vmem),
        cost_estimate=cost,
    )(adj_p, xw_s, dinv_p)

    return out_p[:n, :cout]


# ----------------------------------------------------------------------------
# Spectral branch.
#   Phase 1: per-row-tile partials of U^T @ (x @ W)  (fully parallel grid).
#   XLA:     vutx = V[:,None] * sum(partials)        (tiny [K, Cout] matrix).
#   Phase 2: out  = U @ vutx.
# ----------------------------------------------------------------------------
def _spectral_partial_kernel(x_ref, w_ref, u_ref, o_ref):
    xw = jnp.dot(x_ref[...], w_ref[...], preferred_element_type=jnp.float32)
    # Contract dim 0 of U against dim 0 of xw (no materialized transpose).
    utxw = lax.dot_general(u_ref[...], xw,
                           dimension_numbers=(((0,), (0,)), ((), ())),
                           preferred_element_type=jnp.float32)
    o_ref[...] = utxw[None].astype(o_ref.dtype)


def _spectral_out_kernel(u_ref, vutx_ref, o_ref):
    o_ref[...] = jnp.dot(u_ref[...], vutx_ref[...],
                         preferred_element_type=jnp.float32).astype(o_ref.dtype)


def sat_conv_spectral(x, w, u, v):
    """Spectral branch: out = (U * V) @ (U^T @ (x @ W))."""
    n, cin = x.shape
    cout = w.shape[1]
    k = u.shape[1]
    dtype = x.dtype

    vmem = _vmem_limit_bytes()
    TM = _row_tile(n)
    n_pad = _round_up(n, TM)
    cp = _lane_pad(cout)
    kp = _round_up(k, 8)        # sublane pad only: K is small, don't inflate U 16x
    nm = n_pad // TM
    pad = n_pad - n

    x_p = jnp.pad(x, ((0, pad), (0, 0))) if pad else x
    w_p = jnp.pad(w, ((0, 0), (0, cp - cout))) if cp != cout else w
    u_p = jnp.pad(u, ((0, pad), (0, kp - k))) if (pad or kp != k) else u
    v_f = v.astype(jnp.float32)
    v_p = jnp.pad(v_f, (0, kp - k)) if kp != k else v_f

    # Phase 1: fully parallel over row tiles (both v7x TensorCores engage);
    # each step emits a small [K, Cout] partial.
    partials = pl.pallas_call(
        _spectral_partial_kernel,
        out_shape=jax.ShapeDtypeStruct((nm, kp, cp), jnp.float32),
        grid=(nm,),
        in_specs=[
            pl.BlockSpec((TM, cin), lambda i: (i, 0)),
            pl.BlockSpec((cin, cp), lambda i: (0, 0)),     # W resident
            pl.BlockSpec((TM, kp), lambda i: (i, 0)),
        ],
        out_specs=pl.BlockSpec((1, kp, cp), lambda i: (i, 0, 0)),
        compiler_params=pltpu.CompilerParams(
            dimension_semantics=("parallel",),
            vmem_limit_bytes=vmem),
    )(x_p, w_p, u_p)

    # Tiny reduction + eigenvalue scaling on the [K, Cout] side (plain XLA).
    vutx = jnp.sum(partials, axis=0) * v_p[:, None]

    # Phase 2: stream row tiles of U against the VMEM-resident [K, Cout] matrix.
    out_p = pl.pallas_call(
        _spectral_out_kernel,
        out_shape=jax.ShapeDtypeStruct((n_pad, cp), dtype),
        grid=(nm,),
        in_specs=[
            pl.BlockSpec((TM, kp), lambda i: (i, 0)),
            pl.BlockSpec((kp, cp), lambda i: (0, 0)),      # vutx resident
        ],
        out_specs=pl.BlockSpec((TM, cp), lambda i: (i, 0)),
        compiler_params=pltpu.CompilerParams(
            dimension_semantics=("parallel",),
            vmem_limit_bytes=vmem),
    )(u_p, vutx)

    return out_p[:n, :cout]


# ----------------------------------------------------------------------------
# Pure-JAX references (for correctness check)
# ----------------------------------------------------------------------------
def ref_dense(x, w, adj):
    xw = x @ w
    adj = adj + jnp.eye(adj.shape[0], dtype=adj.dtype)
    deg = adj.sum(-1)
    dinv = jnp.where(deg > 0, deg ** -0.5, 0.0)
    adj = dinv[:, None] * adj * dinv[None, :]
    return adj @ xw


def ref_spectral(x, w, u, v):
    xw = x @ w
    return (u * v) @ (u.T @ xw)


if __name__ == "__main__":
    N, Cin, Cout, K = 64, 16, 32, 8
    key = jax.random.PRNGKey(0)
    kx, ka, kw, ku, kv = jax.random.split(key, 5)

    # node features
    x = jax.random.normal(kx, (N, Cin), dtype=jnp.float32)

    # symmetric 0/1 adjacency without self loops (deterministic)
    a = (jax.random.uniform(ka, (N, N)) < 0.1).astype(jnp.float32)
    adj = jnp.clip(a + a.T, 0.0, 1.0)
    adj = adj * (1.0 - jnp.eye(N, dtype=jnp.float32))

    # glorot-uniform Linear weight, stored as [Cin, Cout]; bias=False (default)
    limit = (6.0 / (Cin + Cout)) ** 0.5
    w = jax.random.uniform(kw, (Cin, Cout), minval=-limit, maxval=limit,
                           dtype=jnp.float32)

    # spectral inputs: eigenvectors [N, K], eigenvalues [K]
    u = jax.random.normal(ku, (N, K), dtype=jnp.float32) / jnp.sqrt(N)
    v = jax.random.uniform(kv, (K,), dtype=jnp.float32)

    # dense-adjacency branch (bf16 adjacency / projected features -> relaxed tol)
    out_dense = jax.block_until_ready(sat_conv_dense(x, w, adj))
    ref_d = ref_dense(x, w, adj)
    assert jnp.allclose(out_dense, ref_d, atol=3e-2, rtol=3e-2), "dense mismatch"

    # spectral branch (f32 path)
    out_spec = jax.block_until_ready(sat_conv_spectral(x, w, u, v))
    ref_s = ref_spectral(x, w, u, v)
    assert jnp.allclose(out_spec, ref_s, atol=5e-4, rtol=5e-4), "spectral mismatch"

    print("KERNEL_OK")
</pallas_src>

<mosaic_0001>
module attributes {stable_mosaic.version = 11 : i64} {
  func.func @_proj_scale_kernel(%arg0: i32, %arg1: memref<128x16xf32, #tpu.memory_space<vmem>>, %arg2: memref<16x128xf32, #tpu.memory_space<vmem>>, %arg3: memref<128x1xf32, #tpu.memory_space<vmem>>, %arg4: memref<128x128xbf16, #tpu.memory_space<vmem>>) attributes {dimension_semantics = [#tpu.dimension_semantics<parallel>], iteration_bounds = array<i64: 1>, scalar_prefetch = 0 : i64, scratch_operands = 0 : i64, tpu.core_type = #tpu.core_type<tc>, window_params = [{transform_indices = @transform_0, window_bounds = array<i64: 128, 16>}, {pipeline_mode = #tpu.pipeline_mode<synchronous>, transform_indices = @transform_1, window_bounds = array<i64: 16, 128>}, {transform_indices = @transform_2, window_bounds = array<i64: 128, 1>}, {transform_indices = @transform_3, window_bounds = array<i64: 128, 128>}]} {
    %c0 = arith.constant 0 : index
    %c0_0 = arith.constant 0 : index
    %0 = vector.load %arg1[%c0, %c0_0] : memref<128x16xf32, #tpu.memory_space<vmem>>, vector<128x16xf32>
    %c0_1 = arith.constant 0 : index
    %c0_2 = arith.constant 0 : index
    %1 = vector.load %arg2[%c0_1, %c0_2] : memref<16x128xf32, #tpu.memory_space<vmem>>, vector<16x128xf32>
    %cst = arith.constant dense<0.000000e+00> : vector<128x128xf32>
    %2 = tpu.matmul %0, %1, %cst {dimension_numbers = #tpu.dot_dimension_numbers<[1], [0], [0], [1], [0, 0, 1, 1], [], []>} : vector<128x16xf32>, vector<16x128xf32>, vector<128x128xf32> -> vector<128x128xf32>
    %c0_3 = arith.constant 0 : index
    %c0_4 = arith.constant 0 : index
    %3 = vector.load %arg3[%c0_3, %c0_4] : memref<128x1xf32, #tpu.memory_space<vmem>>, vector<128x1xf32>
    %4 = vector.broadcast %3 : vector<128x1xf32> to vector<128x128xf32>
    %5 = arith.mulf %4, %2 : vector<128x128xf32>
    %6 = arith.truncf %5 : vector<128x128xf32> to vector<128x128xbf16>
    %c0_5 = arith.constant 0 : index
    %c0_6 = arith.constant 0 : index
    %7 = vector.load %arg4[%c0_5, %c0_6] : memref<128x128xbf16, #tpu.memory_space<vmem>>, vector<128x128xbf16>
    tpu.vector_store %arg4[%c0_5, %c0_6], %6 {strides = array<i32>} : memref<128x128xbf16, #tpu.memory_space<vmem>>, vector<128x128xbf16>,
    return
  }
  func.func @transform_0(%arg0: i32) -> (i32, i32) {
    %c0_i32 = arith.constant 0 : i32
    %c0_i32_0 = arith.constant 0 : i32
    return %arg0, %c0_i32 : i32, i32
  }
  func.func @transform_1(%arg0: i32) -> (i32, i32) {
    %c0_i32 = arith.constant 0 : i32
    %c0_i32_0 = arith.constant 0 : i32
    %c0_i32_1 = arith.constant 0 : i32
    return %c0_i32, %c0_i32_0 : i32, i32
  }
  func.func @transform_2(%arg0: i32) -> (i32, i32) {
    %c0_i32 = arith.constant 0 : i32
    %c0_i32_0 = arith.constant 0 : i32
    return %arg0, %c0_i32 : i32, i32
  }
  func.func @transform_3(%arg0: i32) -> (i32, i32) {
    %c0_i32 = arith.constant 0 : i32
    %c0_i32_0 = arith.constant 0 : i32
    return %arg0, %c0_i32 : i32, i32
  }
}

</mosaic_0001>

<llo_original>
// kernel: tpu_custom_call.1
$region0: #{tpu_custom_call.1}
  #allocation0 [shape = 'u32[]', space=smem, size = 0x4, offset = 0x4, fixed_abs, tag = 'smem constant byte address 0x4 - core index']
  #allocation1 [shape = 'u32[144,128]{1,0:T(1,128)}', space=vmem, size = 0x12000, scoped, tag = 'internal scratch']
  %s0 = inlined_call_operand.vmem [shape: f32[128,16], index: 0, kind: input, shape index: {}]
  %s1 = inlined_call_operand.vmem [shape: f32[16,128], index: 1, kind: input, shape index: {}]
  %s2 = inlined_call_operand.vmem [shape: f32[128,1], index: 2, kind: input, shape index: {}]
  %s3 = inlined_call_operand.hbm [shape: bf16[128,128], index: 3, kind: output, shape index: {}]
  %s4 = sld [smem:[#allocation0]]
  $region22: #{tpu_custom_call.1} parent=0
    _
  %s6 = ssub.s32 1, %s4
  %s7 = scalar_select 0, %s6, %s4
  $region1: #{tpu_custom_call.1} parent=0
    #allocation2 [shape = 'u8[32768]{0}', space=vmem, size = 0x8000, scoped, tag = 'output window, operand 0, single buffered']
    #allocation3 [shape = 's32[1]{0}', space=sflag, size = 0x4, scoped, tag = 'scoped memory for tpu_custom_call.1']
    %8 = vsyncpa [#allocation3], 0
    // Predicated region
    $region2: #{tpu_custom_call.1} parent=1 // pred_check
      _
    $region3: #{tpu_custom_call.1} parent=1 // pred_check_branch
      %10 = sbr.rel (0) target = $region5
    $region4: #{tpu_custom_call.1} parent=1 // pred_region
      _
    $region5: #{tpu_custom_call.1} parent=1 // pred_fallthru
      _
    // Predicated region
    $region6: #{tpu_custom_call.1} parent=1 // pred_check
      _
    $region7: #{tpu_custom_call.1} parent=1 // pred_check_branch
      %12 = sbr.rel (0) target = $region9
    $region8: #{tpu_custom_call.1} parent=1 // pred_region
      _
    $region9: #{tpu_custom_call.1} parent=1 // pred_fallthru
      _
    // Predicated region
    $region10: #{tpu_custom_call.1} parent=1 // pred_check
      _
    $region11: #{tpu_custom_call.1} parent=1 // pred_check_branch
      %14 = sbr.rel (0) target = $region13
    $region12: #{tpu_custom_call.1} parent=1 // pred_region
      _
    $region13: #{tpu_custom_call.1} parent=1 // pred_fallthru
      _
    %v15 = vld [vmem:[%s0] sm:$0xff]
    %v16 = vld [vmem:[%s0 + $0x8] sm:$0xff]
    %v17 = vld [vmem:[%s0 + $0x10] sm:$0xff]
    %v18 = vld [vmem:[%s0 + $0x18] sm:$0xff]
    %v19 = vld [vmem:[%s0 + $0x20] sm:$0xff]
    %v20 = vld [vmem:[%s0 + $0x28] sm:$0xff]
    %v21 = vld [vmem:[%s0 + $0x30] sm:$0xff]
    %v22 = vld [vmem:[%s0 + $0x38] sm:$0xff]
    %v23 = vld [vmem:[%s0 + $0x40] sm:$0xff]
    %v24 = vld [vmem:[%s0 + $0x48] sm:$0xff]
    %v25 = vld [vmem:[%s0 + $0x50] sm:$0xff]
    %v26 = vld [vmem:[%s0 + $0x58] sm:$0xff]
    %v27 = vld [vmem:[%s0 + $0x60] sm:$0xff]
    %v28 = vld [vmem:[%s0 + $0x68] sm:$0xff]
    %v29 = vld [vmem:[%s0 + $0x70] sm:$0xff]
    %v30 = vld [vmem:[%s0 + $0x78] sm:$0xff]
    %v31 = vld [vmem:[%s1] sm:$0xff]
    %v32 = vld [vmem:[%s1 + $0x8] sm:$0xff]
    %vm33 = vcmask 130048
    %v35 = vsel %vm33, %v15, 0
    %v38 = vsel %vm33, %v16, 0
    %v41 = vsel %vm33, %v17, 0
    %v44 = vsel %vm33, %v18, 0
    %v47 = vsel %vm33, %v19, 0
    %v50 = vsel %vm33, %v20, 0
    %v53 = vsel %vm33, %v21, 0
    %v56 = vsel %vm33, %v22, 0
    %v59 = vsel %vm33, %v23, 0
    %v62 = vsel %vm33, %v24, 0
    %v65 = vsel %vm33, %v25, 0
    %v68 = vsel %vm33, %v26, 0
    %v71 = vsel %vm33, %v27, 0
    %v74 = vsel %vm33, %v28, 0
    %v77 = vsel %vm33, %v29, 0
    %v80 = vsel %vm33, %v30, 0
    %82 = vmatprep.subr.mxu0 0.0
    %83 = vmatpush1.msra.mxu0 %v31
    %84 = vmatprep.subr.mxu0 0.0
    %85 = vmatpush1.msra.mxu0 %v32
    %86 = vmatprep.subr.mxu0 0.0
    %87 = vmatpush1.msra.mxu0 0.0
    %88 = vmatprep.subr.mxu0 0.0
    %89 = vmatpush1.msra.mxu0 0.0
    %90 = vmatprep.subr.mxu0 0.0
    %91 = vmatpush1.msra.mxu0 0.0
    %92 = vmatprep.subr.mxu0 0.0
    %93 = vmatpush1.msra.mxu0 0.0
    %94 = vmatprep.subr.mxu0 0.0
    %95 = vmatpush1.msra.mxu0 0.0
    %96 = vmatprep.subr.mxu0 0.0
    %97 = vmatpush1.msra.mxu0 0.0
    %98 = vmatprep.subr.mxu0 0.0
    %99 = vmatpush1.msra.mxu0 0.0
    %100 = vmatprep.subr.mxu0 0.0
    %101 = vmatpush1.msra.mxu0 0.0
    %102 = vmatprep.subr.mxu0 0.0
    %103 = vmatpush1.msra.mxu0 0.0
    %104 = vmatprep.subr.mxu0 0.0
    %105 = vmatpush1.msra.mxu0 0.0
    %106 = vmatprep.subr.mxu0 0.0
    %107 = vmatpush1.msra.mxu0 0.0
    %108 = vmatprep.subr.mxu0 0.0
    %109 = vmatpush1.msra.mxu0 0.0
    %110 = vmatprep.subr.mxu0 0.0
    %111 = vmatpush1.msra.mxu0 0.0
    %112 = vmatprep.subr.mxu0 0.0
    %113 = vmatpush1.msra.mxu0 0.0
    %114 = vmatprep.subr.mxu0 0.0
    %115 = vmatpush1.msra.mxu0 0.0
    %116 = vmatprep.subr.mxu0 0.0
    %117 = vmatpush1.msra.mxu0 0.0
    %118 = vmatprep.subr.mxu0 0.0
    %119 = vmatpush1.msra.mxu0 0.0
    %120 = vmatprep.subr.mxu0 0.0
    %121 = vmatpush1.msra.mxu0 0.0
    %122 = vmatprep.subr.mxu0 0.0
    %123 = vmatpush1.msra.mxu0 0.0
    %124 = vmatprep.subr.mxu0 0.0
    %125 = vmatpush1.msra.mxu0 0.0
    %126 = vmatprep.subr.mxu0 0.0
    %127 = vmatpush1.msra.mxu0 0.0
    %128 = vmatprep.subr.mxu0 0.0
    %129 = vmatpush1.msra.mxu0 0.0
    %130 = vmatprep.subr.mxu0 0.0
    %131 = vmatpush1.msra.mxu0 0.0
    %132 = vmatprep.subr.mxu0 0.0
    %133 = vmatpush1.msra.mxu0 0.0
    %134 = vmatprep.subr.mxu0 0.0
    %135 = vmatpush1.msra.mxu0 0.0
    %136 = vmatprep.subr.mxu0 0.0
    %137 = vmatpush1.msra.mxu0 0.0
    %138 = vmatprep.subr.mxu0 0.0
    %139 = vmatpush1.msra.mxu0 0.0
    %140 = vmatprep.subr.mxu0 0.0
    %141 = vmatpush1.msra.mxu0 0.0
    %142 = vmatprep.subr.mxu0 0.0
    %143 = vmatpush1.msra.mxu0 0.0
    %144 = vmatprep.subr.mxu0 0.0
    %145 = vmatpush1.msra.mxu0 0.0
    %146 = vmatprep.mubr.f32.mxu0 0.0
    %147 = vmatmul.mubr.f32.gmra.mrb[0].mxu0 %v35
    %v148 = vpop.f32.mrb[0].mxu0
    %v149 = vadd.f32 0.0, %v148
    %v150 = vpop.f32.mrb[0].mxu0
    %151 = vmatprep.mubr.f32.mxu0 0.0
    %152 = vmatmul.mubr.f32.gmra.mrb[0].mxu0 %v38
    %v153 = vpop.f32.mrb[0].mxu0
    %v154 = vadd.f32 0.0, %v153
    %v155 = vpop.f32.mrb[0].mxu0
    %156 = vmatprep.mubr.f32.mxu0 0.0
    %157 = vmatmul.mubr.f32.gmra.mrb[0].mxu0 %v41
    %v158 = vpop.f32.mrb[0].mxu0
    %v159 = vadd.f32 0.0, %v158
    %v160 = vpop.f32.mrb[0].mxu0
    %161 = vmatprep.mubr.f32.mxu0 0.0
    %162 = vmatmul.mubr.f32.gmra.mrb[0].mxu0 %v44
    %v163 = vpop.f32.mrb[0].mxu0
    %v164 = vadd.f32 0.0, %v163
    %v165 = vpop.f32.mrb[0].mxu0
    %166 = vmatprep.mubr.f32.mxu0 0.0
    %167 = vmatmul.mubr.f32.gmra.mrb[0].mxu0 %v47
    %v168 = vpop.f32.mrb[0].mxu0
    %v169 = vadd.f32 0.0, %v168
    %v170 = vpop.f32.mrb[0].mxu0
    %171 = vmatprep.mubr.f32.mxu0 0.0
    %172 = vmatmul.mubr.f32.gmra.mrb[0].mxu0 %v50
    %v173 = vpop.f32.mrb[0].mxu0
    %v174 = vadd.f32 0.0, %v173
    %v175 = vpop.f32.mrb[0].mxu0
    %176 = vmatprep.mubr.f32.mxu0 0.0
    %177 = vmatmul.mubr.f32.gmra.mrb[0].mxu0 %v53
    %v178 = vpop.f32.mrb[0].mxu0
    %v179 = vadd.f32 0.0, %v178
    %v180 = vpop.f32.mrb[0].mxu0
    %181 = vmatprep.mubr.f32.mxu0 0.0
    %182 = vmatmul.mubr.f32.gmra.mrb[0].mxu0 %v56
    %v183 = vpop.f32.mrb[0].mxu0
    %v184 = vadd.f32 0.0, %v183
    %v185 = vpop.f32.mrb[0].mxu0
    %186 = vmatprep.mubr.f32.mxu0 0.0
    %187 = vmatmul.mubr.f32.gmra.mrb[0].mxu0 %v59
    %v188 = vpop.f32.mrb[0].mxu0
    %v189 = vadd.f32 0.0, %v188
    %v190 = vpop.f32.mrb[0].mxu0
    %191 = vmatprep.mubr.f32.mxu0 0.0
    %192 = vmatmul.mubr.f32.gmra.mrb[0].mxu0 %v62
    %v193 = vpop.f32.mrb[0].mxu0
    %v194 = vadd.f32 0.0, %v193
    %v195 = vpop.f32.mrb[0].mxu0
    %196 = vmatprep.mubr.f32.mxu0 0.0
    %197 = vmatmul.mubr.f32.gmra.mrb[0].mxu0 %v65
    %v198 = vpop.f32.mrb[0].mxu0
    %v199 = vadd.f32 0.0, %v198
    %v200 = vpop.f32.mrb[0].mxu0
    %201 = vmatprep.mubr.f32.mxu0 0.0
    %202 = vmatmul.mubr.f32.gmra.mrb[0].mxu0 %v68
    %v203 = vpop.f32.mrb[0].mxu0
    %v204 = vadd.f32 0.0, %v203
    %v205 = vpop.f32.mrb[0].mxu0
    %206 = vmatprep.mubr.f32.mxu0 0.0
    %207 = vmatmul.mubr.f32.gmra.mrb[0].mxu0 %v71
    %v208 = vpop.f32.mrb[0].mxu0
    %v209 = vadd.f32 0.0, %v208
    %v210 = vpop.f32.mrb[0].mxu0
    %211 = vmatprep.mubr.f32.mxu0 0.0
    %212 = vmatmul.mubr.f32.gmra.mrb[0].mxu0 %v74
    %v213 = vpop.f32.mrb[0].mxu0
    %v214 = vadd.f32 0.0, %v213
    %v215 = vpop.f32.mrb[0].mxu0
    %216 = vmatprep.mubr.f32.mxu0 0.0
    %217 = vmatmul.mubr.f32.gmra.mrb[0].mxu0 %v77
    %v218 = vpop.f32.mrb[0].mxu0
    %v219 = vadd.f32 0.0, %v218
    %v220 = vpop.f32.mrb[0].mxu0
    %221 = vmatprep.mubr.f32.mxu0 0.0
    %222 = vmatmul.mubr.f32.gmra.mrb[0].mxu0 %v80
    %v223 = vpop.f32.mrb[0].mxu0
    %v224 = vadd.f32 0.0, %v223
    %v225 = vpop.f32.mrb[0].mxu0
    %226 = vdwg.mxu0
    %v227 = vld [vmem:[%s2] sm:$0xff]
    %v228 = vld [vmem:[%s2 + $0x8] sm:$0xff]
    %v229 = vld [vmem:[%s2 + $0x10] sm:$0xff]
    %v230 = vld [vmem:[%s2 + $0x18] sm:$0xff]
    %v231 = vld [vmem:[%s2 + $0x20] sm:$0xff]
    %v232 = vld [vmem:[%s2 + $0x28] sm:$0xff]
    %v233 = vld [vmem:[%s2 + $0x30] sm:$0xff]
    %v234 = vld [vmem:[%s2 + $0x38] sm:$0xff]
    %v235 = vld [vmem:[%s2 + $0x40] sm:$0xff]
    %v236 = vld [vmem:[%s2 + $0x48] sm:$0xff]
    %v237 = vld [vmem:[%s2 + $0x50] sm:$0xff]
    %v238 = vld [vmem:[%s2 + $0x58] sm:$0xff]
    %v239 = vld [vmem:[%s2 + $0x60] sm:$0xff]
    %v240 = vld [vmem:[%s2 + $0x68] sm:$0xff]
    %v241 = vld [vmem:[%s2 + $0x70] sm:$0xff]
    %v242 = vld [vmem:[%s2 + $0x78] sm:$0xff]
    %244 = vset.pattern.permute.xlu0 0
    %245 = vperm.xlu0 %244, %v227
    %v246 = vpop.permute.xlu0 %245
    %249 = vset.pattern.permute.xlu0 0
    %250 = vperm.xlu0 %249, %v228
    %v251 = vpop.permute.xlu0 %250
    %254 = vset.pattern.permute.xlu0 0
    %255 = vperm.xlu0 %254, %v229
    %v256 = vpop.permute.xlu0 %255
    %259 = vset.pattern.permute.xlu0 0
    %260 = vperm.xlu0 %259, %v230
    %v261 = vpop.permute.xlu0 %260
    %264 = vset.pattern.permute.xlu0 0
    %265 = vperm.xlu0 %264, %v231
    %v266 = vpop.permute.xlu0 %265
    %269 = vset.pattern.permute.xlu0 0
    %270 = vperm.xlu0 %269, %v232
    %v271 = vpop.permute.xlu0 %270
    %274 = vset.pattern.permute.xlu0 0
    %275 = vperm.xlu0 %274, %v233
    %v276 = vpop.permute.xlu0 %275
    %279 = vset.pattern.permute.xlu0 0
    %280 = vperm.xlu0 %279, %v234
    %v281 = vpop.permute.xlu0 %280
    %284 = vset.pattern.permute.xlu0 0
    %285 = vperm.xlu0 %284, %v235
    %v286 = vpop.permute.xlu0 %285
    %289 = vset.pattern.permute.xlu0 0
    %290 = vperm.xlu0 %289, %v236
    %v291 = vpop.permute.xlu0 %290
    %294 = vset.pattern.permute.xlu0 0
    %295 = vperm.xlu0 %294, %v237
    %v296 = vpop.permute.xlu0 %295
    %299 = vset.pattern.permute.xlu0 0
    %300 = vperm.xlu0 %299, %v238
    %v301 = vpop.permute.xlu0 %300
    %304 = vset.pattern.permute.xlu0 0
    %305 = vperm.xlu0 %304, %v239
    %v306 = vpop.permute.xlu0 %305
    %309 = vset.pattern.permute.xlu0 0
    %310 = vperm.xlu0 %309, %v240
    %v311 = vpop.permute.xlu0 %310
    %314 = vset.pattern.permute.xlu0 0
    %315 = vperm.xlu0 %314, %v241
    %v316 = vpop.permute.xlu0 %315
    %319 = vset.pattern.permute.xlu0 0
    %320 = vperm.xlu0 %319, %v242
    %v321 = vpop.permute.xlu0 %320
    %v323 = vmul.f32 %v246, %v149
    %v324 = vmul.f32 %v251, %v154
    %v325 = vmul.f32 %v256, %v159
    %v326 = vmul.f32 %v261, %v164
    %v327 = vmul.f32 %v266, %v169
    %v328 = vmul.f32 %v271, %v174
    %v329 = vmul.f32 %v276, %v179
    %v330 = vmul.f32 %v281, %v184
    %v331 = vmul.f32 %v286, %v189
    %v332 = vmul.f32 %v291, %v194
    %v333 = vmul.f32 %v296, %v199
    %v334 = vmul.f32 %v301, %v204
    %v335 = vmul.f32 %v306, %v209
    %v336 = vmul.f32 %v311, %v214
    %v337 = vmul.f32 %v316, %v219
    %v338 = vmul.f32 %v321, %v224
    %v339 = vpack.c.bf16 %v324, %v323
    %v340 = vpack.c.bf16 %v326, %v325
    %v341 = vpack.c.bf16 %v328, %v327
    %v342 = vpack.c.bf16 %v330, %v329
    %v343 = vpack.c.bf16 %v332, %v331
    %v344 = vpack.c.bf16 %v334, %v333
    %v345 = vpack.c.bf16 %v336, %v335
    %v346 = vpack.c.bf16 %v338, %v337
    %v355 = vunpack.c.l.b16 %v339
    %v356 = vunpack.c.h.b16 %v339
    %v357 = vunpack.c.l.b16 %v340
    %v358 = vunpack.c.h.b16 %v340
    %v359 = vunpack.c.l.b16 %v341
    %v360 = vunpack.c.h.b16 %v341
    %v361 = vunpack.c.l.b16 %v342
    %v362 = vunpack.c.h.b16 %v342
    %v363 = vunpack.c.l.b16 %v343
    %v364 = vunpack.c.h.b16 %v343
    %v365 = vunpack.c.l.b16 %v344
    %v366 = vunpack.c.h.b16 %v344
    %v367 = vunpack.c.l.b16 %v345
    %v368 = vunpack.c.h.b16 %v345
    %v369 = vunpack.c.l.b16 %v346
    %v370 = vunpack.c.h.b16 %v346
    %v371 = vpack.c.b16 %v355, %v355
    %v372 = vpack.c.b16 %v356, %v356
    %v373 = vpack.c.b16 %v357, %v357
    %v374 = vpack.c.b16 %v358, %v358
    %v375 = vpack.c.b16 %v359, %v359
    %v376 = vpack.c.b16 %v360, %v360
    %v377 = vpack.c.b16 %v361, %v361
    %v378 = vpack.c.b16 %v362, %v362
    %v379 = vpack.c.b16 %v363, %v363
    %v380 = vpack.c.b16 %v364, %v364
    %v381 = vpack.c.b16 %v365, %v365
    %v382 = vpack.c.b16 %v366, %v366
    %v383 = vpack.c.b16 %v367, %v367
    %v384 = vpack.c.b16 %v368, %v368
    %v385 = vpack.c.b16 %v369, %v369
    %v386 = vpack.c.b16 %v370, %v370
    %403 = vst [vmem:[#allocation2] sm:$0xf] %v371
    %404 = vst [vmem:[#allocation2 + $0x4] sm:$0xf] %v372
    %405 = vst [vmem:[#allocation2 + $0x8] sm:$0xf] %v373
    %406 = vst [vmem:[#allocation2 + $0xc] sm:$0xf] %v374
    %407 = vst [vmem:[#allocation2 + $0x10] sm:$0xf] %v375
    %408 = vst [vmem:[#allocation2 + $0x14] sm:$0xf] %v376
    %409 = vst [vmem:[#allocation2 + $0x18] sm:$0xf] %v377
    %410 = vst [vmem:[#allocation2 + $0x1c] sm:$0xf] %v378
    %411 = vst [vmem:[#allocation2 + $0x20] sm:$0xf] %v379
    %412 = vst [vmem:[#allocation2 + $0x24] sm:$0xf] %v380
    %413 = vst [vmem:[#allocation2 + $0x28] sm:$0xf] %v381
    %414 = vst [vmem:[#allocation2 + $0x2c] sm:$0xf] %v382
    %415 = vst [vmem:[#allocation2 + $0x30] sm:$0xf] %v383
    %416 = vst [vmem:[#allocation2 + $0x34] sm:$0xf] %v384
    %417 = vst [vmem:[#allocation2 + $0x38] sm:$0xf] %v385
    %418 = vst [vmem:[#allocation2 + $0x3c] sm:$0xf] %v386
    // Predicated region
    $region14: #{tpu_custom_call.1} parent=1 // pred_check
      _
    $region15: #{tpu_custom_call.1} parent=1 // pred_check_branch
      %420 = sbr.rel (0) target = $region17
    $region16: #{tpu_custom_call.1} parent=1 // pred_region
      %s422 = ssub.s32 1024, 1024
      %423 = vsyncadd [#allocation3], %s422
      %s424 = sshll.u32 [#allocation2], 4
      %s425 = int_to_ptr.vmem [resolvable:$true] %s424
      %430 = dma.vmem_to_hbm [thread:$0]  %s425, 1024, %s3, [#allocation3], 64, 64, 4
    $region17: #{tpu_custom_call.1} parent=1 // pred_fallthru
      _
    // Predicated region
    $region18: #{tpu_custom_call.1} parent=1 // pred_check
      _
    $region19: #{tpu_custom_call.1} parent=1 // pred_check_branch
      %432 = sbr.rel (0) target = $region21
    $region20: #{tpu_custom_call.1} parent=1 // pred_region
      %433 = dma.done [#allocation3], 1024
    $region21: #{tpu_custom_call.1} parent=1 // pred_fallthru
      _
    %434 = vsyncpa [#allocation3], 1

</llo_original>
